<compile_context>
chip_gen: v7x
topology: tpu7x:2x2x1
jax: 0.10.0
libtpu: 0.0.40
codegen_flags: <defaults>
</compile_context>

<pallas_src>
import jax
import jax.numpy as jnp
import numpy as np
from jax.experimental import pallas as pl
from jax.experimental.pallas import tpu as pltpu

LANE = 128        # lane width; all feature dims zero-padded to this
POOL_ROWS = 8     # pooled rows padded to a full (8,128) sublane tile


# ------------------------------ fused Pallas kernel ------------------------------ #

def _make_gcn4_kernel(num_graphs, nodes_per_graph):
    B, NPG = num_graphs, nodes_per_graph
    assert B <= POOL_ROWS

    def kernel(a_ref, x_ref, w_ref, p_ref, o_ref):
        f32, bf16 = jnp.float32, jnp.bfloat16
        a = a_ref[...]                                                # (N, N) bf16

        # ---- conv1: X @ W1 is rank-1 (Cin == 1) -> VPU outer product, no K=1 MXU op
        xw = (x_ref[...] * p_ref[0:1, :]).astype(bf16)                # (N, 128) bf16
        h = jnp.dot(a, xw, preferred_element_type=f32)                # MXU, f32 acc
        h = jnp.maximum(h + p_ref[1:2, :], 0.0).astype(bf16)          # bf16 activations
        # TODO(synk): torch.nn.Dropout is identity at inference time; no RNG masking.

        # ---- conv2..conv4: A_hat @ (h @ Wk)  (Cout <= Cin, transform first)
        for k in range(3):
            xw = jnp.dot(h, w_ref[k], preferred_element_type=f32).astype(bf16)
            h = jnp.dot(a, xw, preferred_element_type=f32)
            h = jnp.maximum(h + p_ref[k + 2:k + 3, :], 0.0).astype(bf16)

        # ---- global_max_pool: graphs are contiguous node blocks -> static sublane
        # slices + reduce (no mask / selects), padded to a full (8,128) tile so the
        # MLP matmuls and the final store are lane- and sublane-dense.
        pieces = [jnp.max(h[g * NPG:(g + 1) * NPG, :].astype(f32),
                          axis=0, keepdims=True) for g in range(B)]
        if POOL_ROWS > B:
            pieces.append(jnp.zeros((POOL_ROWS - B, LANE), f32))
        pooled = jnp.concatenate(pieces, axis=0).astype(bf16)         # (8, 128)

        # ---- MLP head: relu(lin1) -> lin2
        h1 = jnp.dot(pooled, w_ref[3], preferred_element_type=f32) + p_ref[5:6, :]
        h1 = jnp.maximum(h1, 0.0).astype(bf16)
        out = jnp.dot(h1, w_ref[4], preferred_element_type=f32) + p_ref[6:7, :]
        o_ref[...] = out                                              # full (8,128) store

    return kernel


# ------------------------------ wrapper / layout plumbing ------------------------------ #

def _pad_square(w):
    out = jnp.zeros((LANE, LANE), jnp.float32)
    return out.at[:w.shape[0], :w.shape[1]].set(w.astype(jnp.float32))


def _pad_row(v):
    out = jnp.zeros((LANE,), jnp.float32)
    return out.at[:v.shape[-1]].set(v.reshape(-1).astype(jnp.float32))


def gcn4_forward_pallas(x, a_hat, params, *, num_graphs, nodes_per_graph, out_dim=2):
    """x: (G, N, 1) node feats; a_hat: (G, N, N) normalized adjacencies.

    G independent graph-batches run over the grid; within each batch the graphs
    occupy contiguous blocks of `nodes_per_graph` nodes (PyG-style batching).
    """
    G, N, _ = x.shape
    bf16 = jnp.bfloat16
    (w1, b1), (w2, b2), (w3, b3), (w4, b4) = params["convs"]

    # Consolidated parameter inputs: one (5,128,128) bf16 weight stack and one
    # (8,128) f32 stack holding [w1_row, b1, b2, b3, b4, lb1, lb2, 0].
    wstack = jnp.stack(
        [_pad_square(w2), _pad_square(w3), _pad_square(w4),
         _pad_square(params["lw1"]), _pad_square(params["lw2"])]).astype(bf16)
    pstack = jnp.stack(
        [_pad_row(w1), _pad_row(b1), _pad_row(b2), _pad_row(b3),
         _pad_row(b4), _pad_row(params["lb1"]), _pad_row(params["lb2"]),
         jnp.zeros((LANE,), jnp.float32)])

    kernel = _make_gcn4_kernel(num_graphs, nodes_per_graph)

    out_padded = pl.pallas_call(
        kernel,
        grid=(G,),   # one graph-batch per grid step; weights map to the same block
        in_specs=[
            pl.BlockSpec((None, N, N), lambda g: (g, 0, 0)),      # A_hat[g]
            pl.BlockSpec((None, N, 1), lambda g: (g, 0, 0)),      # x[g]
            pl.BlockSpec((5, LANE, LANE), lambda g: (0, 0, 0)),   # stacked weights (resident)
            pl.BlockSpec((POOL_ROWS, LANE), lambda g: (0, 0)),    # w1 row + biases (resident)
        ],
        out_specs=pl.BlockSpec((None, POOL_ROWS, LANE), lambda g: (g, 0, 0)),
        out_shape=jax.ShapeDtypeStruct((G, POOL_ROWS, LANE), jnp.float32),
        compiler_params=pltpu.CompilerParams(
            dimension_semantics=("parallel",)),   # v7x: shard batches over both TCs
    )(a_hat.astype(bf16), x.astype(jnp.float32), wstack, pstack)

    return out_padded[:, :num_graphs, :out_dim]


# ------------------------------ graph / reference helpers ------------------------------ #

def build_norm_adj(edge_index, edge_weight, num_nodes):
    """Dense A_hat = D^-1/2 (A + I) D^-1/2, matching PyG GCNConv gcn_norm."""
    row = edge_index[0]
    col = edge_index[1]
    loop = jnp.arange(num_nodes, dtype=edge_index.dtype)
    row = jnp.concatenate([row, loop])
    col = jnp.concatenate([col, loop])
    w = jnp.concatenate([edge_weight, jnp.ones((num_nodes,), jnp.float32)])
    deg = jnp.zeros((num_nodes,), jnp.float32).at[col].add(w)
    dinv = jnp.where(deg > 0, jax.lax.rsqrt(deg), 0.0)
    norm = dinv[row] * w * dinv[col]
    # aggregation at the target (col) node: out[j] = sum_i A[j, i] * x[i]
    return jnp.zeros((num_nodes, num_nodes), jnp.float32).at[col, row].add(norm)


def reference_forward(x, a_hat, params, num_graphs, nodes_per_graph):
    def one(xb, ab):
        h = xb
        for w, b in params["convs"]:
            h = jnp.maximum(ab @ (h @ w) + b, 0.0)
        pooled = jnp.max(h.reshape(num_graphs, nodes_per_graph, -1), axis=1)
        h1 = jnp.maximum(pooled @ params["lw1"] + params["lb1"], 0.0)
        return h1 @ params["lw2"] + params["lb2"]
    return jax.vmap(one)(x, a_hat)


# -------------------------------------- main -------------------------------------- #

if __name__ == "__main__":
    key = jax.random.PRNGKey(0)
    nodes_per_graph = 16
    num_graphs = 2            # graphs per batch
    num_batches = 2           # independent graph-batches per pallas_call (grid axis)
    n = nodes_per_graph * num_graphs

    # Small deterministic topology: bidirectional ring inside each graph.
    rows, cols = [], []
    for g in range(num_graphs):
        off = g * nodes_per_graph
        for i in range(nodes_per_graph):
            j = (i + 1) % nodes_per_graph
            rows += [off + i, off + j]
            cols += [off + j, off + i]
    edge_index = jnp.array([rows, cols], dtype=jnp.int32)            # (2, E)

    keys = jax.random.split(key, 16)
    edge_weight = jax.random.uniform(keys[0], (num_batches, edge_index.shape[1]),
                                     jnp.float32, 0.5, 1.5)
    x = jax.random.normal(keys[1], (num_batches, n, 1), jnp.float32)  # (G, N, 1)
    a_hat = jnp.stack([build_norm_adj(edge_index, edge_weight[b], n)
                       for b in range(num_batches)])                  # (G, N, N)

    # Deterministic parameters (shapes from GCN_4.__init__); biases stored as (1, C).
    def winit(k, shape, scale=0.1):
        return jax.random.normal(k, shape, jnp.float32) * scale

    wkeys = keys[2:]
    conv_dims = [(1, 128), (128, 96), (96, 64), (64, 32)]
    convs, ki = [], 0
    for cin, cout in conv_dims:
        w = winit(wkeys[ki], (cin, cout)); ki += 1
        b = winit(wkeys[ki], (1, cout), 0.05); ki += 1
        convs.append((w, b))
    lw1 = winit(wkeys[ki], (32, 32)); ki += 1
    lb1 = winit(wkeys[ki], (1, 32), 0.05); ki += 1
    lw2 = winit(wkeys[ki], (32, 2)); ki += 1
    lb2 = winit(wkeys[ki], (1, 2), 0.05); ki += 1
    params = {"convs": convs, "lw1": lw1, "lb1": lb1, "lw2": lw2, "lb2": lb2}

    out = gcn4_forward_pallas(x, a_hat, params,
                              num_graphs=num_graphs, nodes_per_graph=nodes_per_graph)
    out = jax.block_until_ready(out)

    ref = reference_forward(x, a_hat, params, num_graphs, nodes_per_graph)
    np.testing.assert_allclose(np.asarray(out), np.asarray(ref), rtol=2e-2, atol=2e-2)
    assert out.shape == (num_batches, num_graphs, 2)

    print("KERNEL_OK")
</pallas_src>

<mosaic_0001>
module attributes {stable_mosaic.version = 11 : i64} {
  func.func @kernel(%arg0: i32, %arg1: memref<1x32x32xbf16, #tpu.memory_space<vmem>>, %arg2: memref<1x32x1xf32, #tpu.memory_space<vmem>>, %arg3: memref<5x128x128xbf16, #tpu.memory_space<vmem>>, %arg4: memref<8x128xf32, #tpu.memory_space<vmem>>, %arg5: memref<1x8x128xf32, #tpu.memory_space<vmem>>) attributes {dimension_semantics = [#tpu.dimension_semantics<parallel>], iteration_bounds = array<i64: 2>, scalar_prefetch = 0 : i64, scratch_operands = 0 : i64, tpu.core_type = #tpu.core_type<tc>, window_params = [{transform_indices = @transform_0, window_bounds = array<i64: 1, 32, 32>}, {transform_indices = @transform_1, window_bounds = array<i64: 1, 32, 1>}, {pipeline_mode = #tpu.pipeline_mode<synchronous>, transform_indices = @transform_2, window_bounds = array<i64: 5, 128, 128>}, {pipeline_mode = #tpu.pipeline_mode<synchronous>, transform_indices = @transform_3, window_bounds = array<i64: 8, 128>}, {transform_indices = @transform_4, window_bounds = array<i64: 1, 8, 128>}]} {
    %c0 = arith.constant 0 : index
    %c0_0 = arith.constant 0 : index
    %c0_1 = arith.constant 0 : index
    %0 = vector.load %arg1[%c0, %c0_0, %c0_1] : memref<1x32x32xbf16, #tpu.memory_space<vmem>>, vector<1x32x32xbf16>
    %1 = vector.shape_cast %0 : vector<1x32x32xbf16> to vector<32x32xbf16>
    %c0_2 = arith.constant 0 : index
    %c0_3 = arith.constant 0 : index
    %c0_4 = arith.constant 0 : index
    %2 = vector.load %arg2[%c0_2, %c0_3, %c0_4] : memref<1x32x1xf32, #tpu.memory_space<vmem>>, vector<1x32x1xf32>
    %3 = vector.shape_cast %2 : vector<1x32x1xf32> to vector<32x1xf32>
    %c0_5 = arith.constant 0 : index
    %c0_6 = arith.constant 0 : index
    %4 = vector.load %arg4[%c0_5, %c0_6] : memref<8x128xf32, #tpu.memory_space<vmem>>, vector<1x128xf32>
    %5 = vector.broadcast %3 : vector<32x1xf32> to vector<32x128xf32>
    %6 = vector.broadcast %4 : vector<1x128xf32> to vector<32x128xf32>
    %7 = arith.mulf %5, %6 : vector<32x128xf32>
    %8 = arith.truncf %7 : vector<32x128xf32> to vector<32x128xbf16>
    %cst = arith.constant dense<0.000000e+00> : vector<32x128xf32>
    %9 = tpu.matmul %1, %8, %cst {dimension_numbers = #tpu.dot_dimension_numbers<[1], [0], [0], [1], [0, 0, 1, 1], [], []>} : vector<32x32xbf16>, vector<32x128xbf16>, vector<32x128xf32> -> vector<32x128xf32>
    %c1 = arith.constant 1 : index
    %c0_7 = arith.constant 0 : index
    %10 = vector.load %arg4[%c1, %c0_7] : memref<8x128xf32, #tpu.memory_space<vmem>>, vector<1x128xf32>
    %11 = vector.broadcast %10 : vector<1x128xf32> to vector<32x128xf32>
    %12 = arith.addf %9, %11 : vector<32x128xf32>
    %cst_8 = arith.constant 0.000000e+00 : f32
    %13 = vector.broadcast %cst_8 : f32 to vector<32x128xf32>
    %14 = arith.maximumf %12, %13 : vector<32x128xf32>
    %15 = arith.truncf %14 : vector<32x128xf32> to vector<32x128xbf16>
    %c0_9 = arith.constant 0 : index
    %c0_10 = arith.constant 0 : index
    %c0_11 = arith.constant 0 : index
    %16 = vector.load %arg3[%c0_9, %c0_10, %c0_11] : memref<5x128x128xbf16, #tpu.memory_space<vmem>>, vector<1x128x128xbf16>
    %17 = vector.shape_cast %16 : vector<1x128x128xbf16> to vector<128x128xbf16>
    %cst_12 = arith.constant dense<0.000000e+00> : vector<32x128xf32>
    %18 = tpu.matmul %15, %17, %cst_12 {dimension_numbers = #tpu.dot_dimension_numbers<[1], [0], [0], [1], [0, 0, 1, 1], [], []>} : vector<32x128xbf16>, vector<128x128xbf16>, vector<32x128xf32> -> vector<32x128xf32>
    %19 = arith.truncf %18 : vector<32x128xf32> to vector<32x128xbf16>
    %cst_13 = arith.constant dense<0.000000e+00> : vector<32x128xf32>
    %20 = tpu.matmul %1, %19, %cst_13 {dimension_numbers = #tpu.dot_dimension_numbers<[1], [0], [0], [1], [0, 0, 1, 1], [], []>} : vector<32x32xbf16>, vector<32x128xbf16>, vector<32x128xf32> -> vector<32x128xf32>
    %c2 = arith.constant 2 : index
    %c0_14 = arith.constant 0 : index
    %21 = vector.load %arg4[%c2, %c0_14] : memref<8x128xf32, #tpu.memory_space<vmem>>, vector<1x128xf32>
    %22 = vector.broadcast %21 : vector<1x128xf32> to vector<32x128xf32>
    %23 = arith.addf %20, %22 : vector<32x128xf32>
    %cst_15 = arith.constant 0.000000e+00 : f32
    %24 = vector.broadcast %cst_15 : f32 to vector<32x128xf32>
    %25 = arith.maximumf %23, %24 : vector<32x128xf32>
    %26 = arith.truncf %25 : vector<32x128xf32> to vector<32x128xbf16>
    %c1_16 = arith.constant 1 : index
    %c0_17 = arith.constant 0 : index
    %c0_18 = arith.constant 0 : index
    %27 = vector.load %arg3[%c1_16, %c0_17, %c0_18] : memref<5x128x128xbf16, #tpu.memory_space<vmem>>, vector<1x128x128xbf16>
    %28 = vector.shape_cast %27 : vector<1x128x128xbf16> to vector<128x128xbf16>
    %cst_19 = arith.constant dense<0.000000e+00> : vector<32x128xf32>
    %29 = tpu.matmul %26, %28, %cst_19 {dimension_numbers = #tpu.dot_dimension_numbers<[1], [0], [0], [1], [0, 0, 1, 1], [], []>} : vector<32x128xbf16>, vector<128x128xbf16>, vector<32x128xf32> -> vector<32x128xf32>
    %30 = arith.truncf %29 : vector<32x128xf32> to vector<32x128xbf16>
    %cst_20 = arith.constant dense<0.000000e+00> : vector<32x128xf32>
    %31 = tpu.matmul %1, %30, %cst_20 {dimension_numbers = #tpu.dot_dimension_numbers<[1], [0], [0], [1], [0, 0, 1, 1], [], []>} : vector<32x32xbf16>, vector<32x128xbf16>, vector<32x128xf32> -> vector<32x128xf32>
    %c3 = arith.constant 3 : index
    %c0_21 = arith.constant 0 : index
    %32 = vector.load %arg4[%c3, %c0_21] : memref<8x128xf32, #tpu.memory_space<vmem>>, vector<1x128xf32>
    %33 = vector.broadcast %32 : vector<1x128xf32> to vector<32x128xf32>
    %34 = arith.addf %31, %33 : vector<32x128xf32>
    %cst_22 = arith.constant 0.000000e+00 : f32
    %35 = vector.broadcast %cst_22 : f32 to vector<32x128xf32>
    %36 = arith.maximumf %34, %35 : vector<32x128xf32>
    %37 = arith.truncf %36 : vector<32x128xf32> to vector<32x128xbf16>
    %c2_23 = arith.constant 2 : index
    %c0_24 = arith.constant 0 : index
    %c0_25 = arith.constant 0 : index
    %38 = vector.load %arg3[%c2_23, %c0_24, %c0_25] : memref<5x128x128xbf16, #tpu.memory_space<vmem>>, vector<1x128x128xbf16>
    %39 = vector.shape_cast %38 : vector<1x128x128xbf16> to vector<128x128xbf16>
    %cst_26 = arith.constant dense<0.000000e+00> : vector<32x128xf32>
    %40 = tpu.matmul %37, %39, %cst_26 {dimension_numbers = #tpu.dot_dimension_numbers<[1], [0], [0], [1], [0, 0, 1, 1], [], []>} : vector<32x128xbf16>, vector<128x128xbf16>, vector<32x128xf32> -> vector<32x128xf32>
    %41 = arith.truncf %40 : vector<32x128xf32> to vector<32x128xbf16>
    %cst_27 = arith.constant dense<0.000000e+00> : vector<32x128xf32>
    %42 = tpu.matmul %1, %41, %cst_27 {dimension_numbers = #tpu.dot_dimension_numbers<[1], [0], [0], [1], [0, 0, 1, 1], [], []>} : vector<32x32xbf16>, vector<32x128xbf16>, vector<32x128xf32> -> vector<32x128xf32>
    %c4 = arith.constant 4 : index
    %c0_28 = arith.constant 0 : index
    %43 = vector.load %arg4[%c4, %c0_28] : memref<8x128xf32, #tpu.memory_space<vmem>>, vector<1x128xf32>
    %44 = vector.broadcast %43 : vector<1x128xf32> to vector<32x128xf32>
    %45 = arith.addf %42, %44 : vector<32x128xf32>
    %cst_29 = arith.constant 0.000000e+00 : f32
    %46 = vector.broadcast %cst_29 : f32 to vector<32x128xf32>
    %47 = arith.maximumf %45, %46 : vector<32x128xf32>
    %48 = arith.truncf %47 : vector<32x128xf32> to vector<32x128xbf16>
    %49 = vector.extract_strided_slice %48 {offsets = [0, 0], sizes = [16, 128], strides = [1, 1]} : vector<32x128xbf16> to vector<16x128xbf16>
    %50 = arith.extf %49 : vector<16x128xbf16> to vector<16x128xf32>
    %cst_30 = arith.constant dense<0xFF800000> : vector<128xf32>
    %51 = vector.multi_reduction <maximumf>, %50, %cst_30 [0] : vector<16x128xf32> to vector<128xf32>
    %52 = vector.shape_cast %51 : vector<128xf32> to vector<1x128xf32>
    %53 = vector.extract_strided_slice %48 {offsets = [16, 0], sizes = [16, 128], strides = [1, 1]} : vector<32x128xbf16> to vector<16x128xbf16>
    %54 = arith.extf %53 : vector<16x128xbf16> to vector<16x128xf32>
    %cst_31 = arith.constant dense<0xFF800000> : vector<128xf32>
    %55 = vector.multi_reduction <maximumf>, %54, %cst_31 [0] : vector<16x128xf32> to vector<128xf32>
    %56 = vector.shape_cast %55 : vector<128xf32> to vector<1x128xf32>
    %cst_32 = arith.constant 0.000000e+00 : f32
    %57 = vector.broadcast %cst_32 : f32 to vector<6x128xf32>
    %58 = tpu.concatenate %52, %56, %57 in 0 : vector<1x128xf32>, vector<1x128xf32>, vector<6x128xf32> -> vector<8x128xf32>
    %59 = arith.truncf %58 : vector<8x128xf32> to vector<8x128xbf16>
    %c3_33 = arith.constant 3 : index
    %c0_34 = arith.constant 0 : index
    %c0_35 = arith.constant 0 : index
    %60 = vector.load %arg3[%c3_33, %c0_34, %c0_35] : memref<5x128x128xbf16, #tpu.memory_space<vmem>>, vector<1x128x128xbf16>
    %61 = vector.shape_cast %60 : vector<1x128x128xbf16> to vector<128x128xbf16>
    %cst_36 = arith.constant dense<0.000000e+00> : vector<8x128xf32>
    %62 = tpu.matmul %59, %61, %cst_36 {dimension_numbers = #tpu.dot_dimension_numbers<[1], [0], [0], [1], [0, 0, 1, 1], [], []>} : vector<8x128xbf16>, vector<128x128xbf16>, vector<8x128xf32> -> vector<8x128xf32>
    %c5 = arith.constant 5 : index
    %c0_37 = arith.constant 0 : index
    %63 = vector.load %arg4[%c5, %c0_37] : memref<8x128xf32, #tpu.memory_space<vmem>>, vector<1x128xf32>
    %64 = vector.broadcast %63 : vector<1x128xf32> to vector<8x128xf32>
    %65 = arith.addf %62, %64 : vector<8x128xf32>
    %cst_38 = arith.constant 0.000000e+00 : f32
    %66 = vector.broadcast %cst_38 : f32 to vector<8x128xf32>
    %67 = arith.maximumf %65, %66 : vector<8x128xf32>
    %68 = arith.truncf %67 : vector<8x128xf32> to vector<8x128xbf16>
    %c4_39 = arith.constant 4 : index
    %c0_40 = arith.constant 0 : index
    %c0_41 = arith.constant 0 : index
    %69 = vector.load %arg3[%c4_39, %c0_40, %c0_41] : memref<5x128x128xbf16, #tpu.memory_space<vmem>>, vector<1x128x128xbf16>
    %70 = vector.shape_cast %69 : vector<1x128x128xbf16> to vector<128x128xbf16>
    %cst_42 = arith.constant dense<0.000000e+00> : vector<8x128xf32>
    %71 = tpu.matmul %68, %70, %cst_42 {dimension_numbers = #tpu.dot_dimension_numbers<[1], [0], [0], [1], [0, 0, 1, 1], [], []>} : vector<8x128xbf16>, vector<128x128xbf16>, vector<8x128xf32> -> vector<8x128xf32>
    %c6 = arith.constant 6 : index
    %c0_43 = arith.constant 0 : index
    %72 = vector.load %arg4[%c6, %c0_43] : memref<8x128xf32, #tpu.memory_space<vmem>>, vector<1x128xf32>
    %73 = vector.broadcast %72 : vector<1x128xf32> to vector<8x128xf32>
    %74 = arith.addf %71, %73 : vector<8x128xf32>
    %c0_44 = arith.constant 0 : index
    %c0_45 = arith.constant 0 : index
    %c0_46 = arith.constant 0 : index
    %75 = vector.load %arg5[%c0_44, %c0_45, %c0_46] : memref<1x8x128xf32, #tpu.memory_space<vmem>>, vector<1x8x128xf32>
    %76 = vector.shape_cast %75 : vector<1x8x128xf32> to vector<8x128xf32>
    %77 = vector.shape_cast %74 : vector<8x128xf32> to vector<1x8x128xf32>
    tpu.vector_store %arg5[%c0_44, %c0_45, %c0_46], %77 {strides = array<i32>} : memref<1x8x128xf32, #tpu.memory_space<vmem>>, vector<1x8x128xf32>,
    return
  }
  func.func @transform_0(%arg0: i32) -> (i32, i32, i32) {
    %c0_i32 = arith.constant 0 : i32
    %c0_i32_0 = arith.constant 0 : i32
    %c0_i32_1 = arith.constant 0 : i32
    return %arg0, %c0_i32, %c0_i32_0 : i32, i32, i32
  }
  func.func @transform_1(%arg0: i32) -> (i32, i32, i32) {
    %c0_i32 = arith.constant 0 : i32
    %c0_i32_0 = arith.constant 0 : i32
    %c0_i32_1 = arith.constant 0 : i32
    return %arg0, %c0_i32, %c0_i32_0 : i32, i32, i32
  }
  func.func @transform_2(%arg0: i32) -> (i32, i32, i32) {
    %c0_i32 = arith.constant 0 : i32
    %c0_i32_0 = arith.constant 0 : i32
    %c0_i32_1 = arith.constant 0 : i32
    %c0_i32_2 = arith.constant 0 : i32
    return %c0_i32, %c0_i32_0, %c0_i32_1 : i32, i32, i32
  }
  func.func @transform_3(%arg0: i32) -> (i32, i32) {
    %c0_i32 = arith.constant 0 : i32
    %c0_i32_0 = arith.constant 0 : i32
    %c0_i32_1 = arith.constant 0 : i32
    return %c0_i32, %c0_i32_0 : i32, i32
  }
  func.func @transform_4(%arg0: i32) -> (i32, i32, i32) {
    %c0_i32 = arith.constant 0 : i32
    %c0_i32_0 = arith.constant 0 : i32
    %c0_i32_1 = arith.constant 0 : i32
    return %arg0, %c0_i32, %c0_i32_0 : i32, i32, i32
  }
}

</mosaic_0001>

<llo_original>
// kernel: tpu_custom_call.1
$region0: #{tpu_custom_call.1}
  #allocation0 [shape = 'u32[]', space=smem, size = 0x4, offset = 0x4, fixed_abs, tag = 'smem constant byte address 0x4 - core index']
  #allocation1 [shape = 'u32[144,128]{1,0:T(1,128)}', space=vmem, size = 0x12000, scoped, tag = 'internal scratch']
  %s0 = inlined_call_operand.vmem [shape: bf16[2,32,32], index: 0, kind: input, shape index: {}]
  %s1 = inlined_call_operand.vmem [shape: f32[2,32,1], index: 1, kind: input, shape index: {}]
  %s2 = inlined_call_operand.hbm [shape: bf16[5,128,128], index: 2, kind: input, shape index: {}]
  %s3 = inlined_call_operand.vmem [shape: f32[8,128], index: 3, kind: input, shape index: {}]
  %s4 = inlined_call_operand.hbm [shape: f32[2,8,128], index: 4, kind: output, shape index: {}]
  %s5 = sld [smem:[#allocation0]]
  $region53: #{tpu_custom_call.1} parent=0
    _
  %s7 = ssub.s32 1, %s5
  %s8 = scalar_select 0, %s7, %s5
  $region1: #{tpu_custom_call.1} parent=0
    #allocation2 [shape = 'u8[163840]{0}', space=vmem, size = 0x28000, scoped, tag = 'input window, operand 2, single buffered']
    #allocation3 [shape = 's32[2]{0}', space=sflag, size = 0x8, scoped, tag = 'scoped memory for tpu_custom_call.1']
    #allocation4 [shape = 's32[2]{0}', space=sflag, size = 0x8, scoped, tag = 'scoped memory for tpu_custom_call.1']
    #allocation5 [shape = 'u8[8192]{0}', space=vmem, size = 0x2000, scoped, tag = 'output window, operand 0']
    %9 = vsyncpa [#allocation3], 0
    %10 = vsyncpa [#allocation4], 0
    %s11 = scalar_lea.sflag [#allocation4], 1
    %12 = vsyncpa %s11, 0
    loop: start=0, step=1, limit=4
    $region2: #{tpu_custom_call.1} parent=1 // loop_pre_header
      _
    $region3: #{tpu_custom_call.1} parent=1 // loop_header
      %s14 = sphi 0, %s18
      %p15 = scmp.ge.s32.totalorder %s14, 4
      %s24 = sphi 0, %s26
      %s27 = sphi 0, %s24
      %s28 = sphi 0, %s27
      %s44 = sphi 0, %s28
      %s50 = sphi 0, %s52
      %s53 = sphi 0, %s50
      %s54 = sphi 0, %s53
      %s70 = sphi 0, %s54
      %s74 = sphi 0, %s74
      %s76 = sphi 0, %s74
      %s77 = sphi 0, %s76
      %s91 = sphi 0, %s77
      %s95 = sphi 0, %s95
      %s97 = sphi 0, %s95
      %s98 = sphi 0, %s97
      %s112 = sphi 0, %s98
      %s118 = sphi 0, %s120
      %s121 = sphi 0, %s118
      %s122 = sphi 0, %s121
      %s138 = sphi 0, %s122
    $region4: #{tpu_custom_call.1} parent=1 // loop_header_branch
      %17 = sbr.rel (%p15) target = $region8
    $region5: #{tpu_custom_call.1} parent=1 // loop_body
      %s19 = ssub.s32 %s14, 1
      %s20 = ssub.s32 %s14, 2
      %s21 = sadd.s32 %s14, 1
      %s22 = ssub.s32 %s14, %s21
      %p23 = scmp.eq.s32.totalorder %s22, 0
      %s25 = sadd.s32 %s24, 1
      %s26 = scalar_select %p23, %s24, %s25
      %p29 = pneg %p23
      %p30 = scmp.eq.s32.totalorder %s14, 1
      %p31 = por %p29, %p30
      %p32 = scmp.ne.s32.totalorder %s24, %s27
      %p33 = scmp.eq.s32.totalorder %s14, 0
      %p34 = por %p32, %p33
      %p35 = scmp.ne.s32.totalorder %s24, %s27
      %p36 = scmp.eq.s32.totalorder %s19, 1
      %p37 = por %p35, %p36
      %p38 = scmp.ne.s32.totalorder %s27, %s28
      %p39 = scmp.eq.s32.totalorder %s19, 0
      %p40 = por %p38, %p39
      %p41 = scmp.ne.s32.totalorder %s27, %s28
      %p42 = scmp.eq.s32.totalorder %s20, 1
      %p43 = por %p41, %p42
      %p45 = scmp.ne.s32.totalorder %s28, %s44
      %p46 = scmp.eq.s32.totalorder %s20, 0
      %p47 = por %p45, %p46
      %s48 = ssub.s32 %s14, %s21
      %p49 = scmp.eq.s32.totalorder %s48, 0
      %s51 = sadd.s32 %s50, 1
      %s52 = scalar_select %p49, %s50, %s51
      %p55 = pneg %p49
      %p56 = scmp.eq.s32.totalorder %s14, 1
      %p57 = por %p55, %p56
      %p58 = scmp.ne.s32.totalorder %s50, %s53
      %p59 = scmp.eq.s32.totalorder %s14, 0
      %p60 = por %p58, %p59
      %p61 = scmp.ne.s32.totalorder %s50, %s53
      %p62 = scmp.eq.s32.totalorder %s19, 1
      %p63 = por %p61, %p62
      %p64 = scmp.ne.s32.totalorder %s53, %s54
      %p65 = scmp.eq.s32.totalorder %s19, 0
      %p66 = por %p64, %p65
      %p67 = scmp.ne.s32.totalorder %s53, %s54
      %p68 = scmp.eq.s32.totalorder %s20, 1
      %p69 = por %p67, %p68
      %p71 = scmp.ne.s32.totalorder %s54, %s70
      %p72 = scmp.eq.s32.totalorder %s20, 0
      %p73 = por %p71, %p72
      %s75 = sadd.s32 %s74, 1
      %p78 = scmp.eq.s32.totalorder %s14, 1
      %p79 = scmp.ne.s32.totalorder %s74, %s76
      %p80 = scmp.eq.s32.totalorder %s14, 0
      %p81 = por %p79, %p80
      %p82 = scmp.ne.s32.totalorder %s74, %s76
      %p83 = scmp.eq.s32.totalorder %s19, 1
      %p84 = por %p82, %p83
      %p85 = scmp.ne.s32.totalorder %s76, %s77
      %p86 = scmp.eq.s32.totalorder %s19, 0
      %p87 = por %p85, %p86
      %p88 = scmp.ne.s32.totalorder %s76, %s77
      %p89 = scmp.eq.s32.totalorder %s20, 1
      %p90 = por %p88, %p89
      %p92 = scmp.ne.s32.totalorder %s77, %s91
      %p93 = scmp.eq.s32.totalorder %s20, 0
      %p94 = por %p92, %p93
      %s96 = sadd.s32 %s95, 1
      %p99 = scmp.eq.s32.totalorder %s14, 1
      %p100 = scmp.ne.s32.totalorder %s95, %s97
      %p101 = scmp.eq.s32.totalorder %s14, 0
      %p102 = por %p100, %p101
      %p103 = scmp.ne.s32.totalorder %s95, %s97
      %p104 = scmp.eq.s32.totalorder %s19, 1
      %p105 = por %p103, %p104
      %p106 = scmp.ne.s32.totalorder %s97, %s98
      %p107 = scmp.eq.s32.totalorder %s19, 0
      %p108 = por %p106, %p107
      %p109 = scmp.ne.s32.totalorder %s97, %s98
      %p110 = scmp.eq.s32.totalorder %s20, 1
      %p111 = por %p109, %p110
      %p113 = scmp.ne.s32.totalorder %s98, %s112
      %p114 = scmp.eq.s32.totalorder %s20, 0
      %p115 = por %p113, %p114
      %s116 = ssub.s32 %s14, %s21
      %p117 = scmp.eq.s32.totalorder %s116, 0
      %s119 = sadd.s32 %s118, 1
      %s120 = scalar_select %p117, %s118, %s119
      %p123 = pneg %p117
      %p124 = scmp.eq.s32.totalorder %s14, 1
      %p125 = por %p123, %p124
      %p126 = scmp.ne.s32.totalorder %s118, %s121
      %p127 = scmp.eq.s32.totalorder %s14, 0
      %p128 = por %p126, %p127
      %p129 = scmp.ne.s32.totalorder %s118, %s121
      %p130 = scmp.eq.s32.totalorder %s19, 1
      %p131 = por %p129, %p130
      %p132 = scmp.ne.s32.totalorder %s121, %s122
      %p133 = scmp.eq.s32.totalorder %s19, 0
      %p134 = por %p132, %p133
      %p135 = scmp.ne.s32.totalorder %s121, %s122
      %p136 = scmp.eq.s32.totalorder %s20, 1
      %p137 = por %p135, %p136
      %p139 = scmp.ne.s32.totalorder %s122, %s138
      %p140 = scmp.eq.s32.totalorder %s20, 0
      %p141 = por %p139, %p140
      %p142 = scmp.le.s32.totalorder 1, %s14
      %p143 = scmp.lt.s32.totalorder %s14, 3
      %p144 = pnand %p142, %p143
      %p145 = pneg %p144
      // Predicated region
      $region9: #{tpu_custom_call.1} parent=5 // pred_check
        _
      $region10: #{tpu_custom_call.1} parent=5 // pred_check_branch
        %147 = sbr.rel (%p144) target = $region12
      $region11: #{tpu_custom_call.1} parent=5 // pred_region
        %s148 = ssub.s32 %s14, 1
        // Predicated region
        $region13: #{tpu_custom_call.1} parent=11 // pred_check
          %p149 = pneg %p87
        $region14: #{tpu_custom_call.1} parent=11 // pred_check_branch
          %151 = sbr.rel (%p149) target = $region16
        $region15: #{tpu_custom_call.1} parent=11 // pred_region
          %s153 = ssub.s32 5120, 5120
          %154 = vsyncadd [#allocation3], %s153
          %s155 = sshll.u32 [#allocation2], 4
          %s156 = int_to_ptr.vmem [resolvable:$true] %s155
          %161 = dma.hbm_to_vmem [thread:$0]  %s2, 5120, %s156, [#allocation3], 64, 64, 4
        $region16: #{tpu_custom_call.1} parent=11 // pred_fallthru
          _
        // Predicated region
        $region17: #{tpu_custom_call.1} parent=11 // pred_check
          %p162 = pneg %p108
        $region18: #{tpu_custom_call.1} parent=11 // pred_check_branch
          %164 = sbr.rel (%p162) target = $region20
        $region19: #{tpu_custom_call.1} parent=11 // pred_region
          _
        $region20: #{tpu_custom_call.1} parent=11 // pred_fallthru
          _
      $region12: #{tpu_custom_call.1} parent=5 // pred_fallthru
        _
      %p165 = scmp.lt.s32.totalorder %s14, 2
      // Predicated region
      $region21: #{tpu_custom_call.1} parent=5 // pred_check
        %p166 = pneg %p165
      $region22: #{tpu_custom_call.1} parent=5 // pred_check_branch
        %168 = sbr.rel (%p166) target = $region24
      $region23: #{tpu_custom_call.1} parent=5 // pred_region
        // Predicated region
        $region25: #{tpu_custom_call.1} parent=23 // pred_check
          %p169 = pneg %p34
        $region26: #{tpu_custom_call.1} parent=23 // pred_check_branch
          %171 = sbr.rel (%p169) target = $region28
        $region27: #{tpu_custom_call.1} parent=23 // pred_region
          %p172 = scmp.lt.s32.totalorder %s14, 1
          %s173 = scalar_select %p172, %s14, 1
          %s174 = smul.addr %s173, 4
          %s175 = smul.addr %s174, 4
          %s176 = scalar_lea.vmem %s0, %s175
        $region28: #{tpu_custom_call.1} parent=23 // pred_fallthru
          _
        // Predicated region
        $region29: #{tpu_custom_call.1} parent=23 // pred_check
          %p177 = pneg %p60
        $region30: #{tpu_custom_call.1} parent=23 // pred_check_branch
          %179 = sbr.rel (%p177) target = $region32
        $region31: #{tpu_custom_call.1} parent=23 // pred_region
          %p180 = scmp.lt.s32.totalorder %s14, 1
          %s181 = scalar_select %p180, %s14, 1
          %s182 = smul.addr %s181, 4
          %s183 = smul.addr %s182, 8
          %s184 = scalar_lea.vmem %s1, %s183
        $region32: #{tpu_custom_call.1} parent=23 // pred_fallthru
          _
      $region24: #{tpu_custom_call.1} parent=5 // pred_fallthru
        _
      %p185 = scmp.le.s32.totalorder 1, %s14
      %p186 = scmp.lt.s32.totalorder %s14, 3
      %p187 = pnand %p185, %p186
      %p188 = pneg %p187
      // Predicated region
      $region33: #{tpu_custom_call.1} parent=5 // pred_check
        _
      $region34: #{tpu_custom_call.1} parent=5 // pred_check_branch
        %190 = sbr.rel (%p187) target = $region36
      $region35: #{tpu_custom_call.1} parent=5 // pred_region
        %s191 = ssub.s32 %s14, 1
        // Predicated region
        $region37: #{tpu_custom_call.1} parent=35 // pred_check
          %p192 = pneg %p87
        $region38: #{tpu_custom_call.1} parent=35 // pred_check_branch
          %194 = sbr.rel (%p192) target = $region40
        $region39: #{tpu_custom_call.1} parent=35 // pred_region
          %195 = dma.done [#allocation3], 5120
        $region40: #{tpu_custom_call.1} parent=35 // pred_fallthru
          _
        %p196 = scmp.lt.s32.totalorder %s19, 1
        %s197 = scalar_select %p196, %s19, 1
        %s198 = smul.addr %s197, 4
        %s199 = smul.addr %s198, 4
        %s200 = scalar_lea.vmem %s0, %s199
        %p201 = pneg %p40
        %p202 = pneg %p37
        %p203 = scmp.lt.s32.totalorder %s19, 1
        %s204 = scalar_select %p203, %s19, 1
        %s205 = smul.addr %s204, 4
        %s206 = smul.addr %s205, 8
        %s207 = scalar_lea.vmem %s1, %s206
        %p208 = pneg %p66
        %p209 = pneg %p63
        %p210 = pneg %p87
        %p211 = pneg %p84
        %p212 = pneg %p108
        %p213 = pneg %p105
        %p214 = pneg %p134
        %p215 = pneg %p131
        %s216 = sand.u32 %s121, 1
        %s217 = scalar_lea.sflag [#allocation4], %s216
        %s218 = sand.u32 %s121, 1
        %s219 = smul.addr %s218, 8
        %s220 = scalar_lea.vmem [#allocation5], %s219
        %p221 = scmp.lt.s32.totalorder %s19, 1
        %s222 = scalar_select %p221, %s19, 1
        %s223 = smul.addr %s222, 4
        %s224 = smul.addr %s223, 4
        %s225 = scalar_lea.vmem %s0, %s224
        %p226 = scmp.lt.s32.totalorder %s19, 1
        %s227 = scalar_select %p226, %s19, 1
        %s228 = smul.addr %s227, 4
        %s229 = smul.addr %s228, 8
        %s230 = scalar_lea.vmem %s1, %s229
        %v232 = vld [vmem:[%s225] sm:$0xf]
        %v233 = vld [vmem:[%s225 + $0x4] sm:$0xf]
        %v234 = vld [vmem:[%s225 + $0x8] sm:$0xf]
        %v235 = vld [vmem:[%s225 + $0xc] sm:$0xf]
        %v236 = vld [vmem:[%s230] sm:$0xff]
        %v237 = vld [vmem:[%s230 + $0x8] sm:$0xff]
        %v238 = vld [vmem:[%s230 + $0x10] sm:$0xff]
        %v239 = vld [vmem:[%s230 + $0x18] sm:$0xff]
        %v240 = vld [vmem:[%s3] sm:$0x1]
        %242 = vset.pattern.permute.xlu0 0
        %243 = vperm.xlu0 %242, %v236
        %v244 = vpop.permute.xlu0 %243
        %247 = vset.pattern.permute.xlu0 0
        %248 = vperm.xlu0 %247, %v237
        %v249 = vpop.permute.xlu0 %248
        %252 = vset.pattern.permute.xlu0 0
        %253 = vperm.xlu0 %252, %v238
        %v254 = vpop.permute.xlu0 %253
        %257 = vset.pattern.permute.xlu0 0
        %258 = vperm.xlu0 %257, %v239
        %v259 = vpop.permute.xlu0 %258
        %v261 = vlaneseq
        %v262 = vshrl.u32 %v261, 7
        %v263 = vsub.s32 0, %v262
        %v264 = vrot.slane %v240, %v263
        %v265 = vmul.f32 %v244, %v264
        %v266 = vmul.f32 %v249, %v264
        %v267 = vmul.f32 %v254, %v264
        %v268 = vmul.f32 %v259, %v264
        %v269 = vpack.c.bf16 %v266, %v265
        %v270 = vpack.c.bf16 %v268, %v267
        %v271 = vld [vmem:[%s3 + $0x1] sm:$0x1]
        %v272 = vlaneseq
        %v273 = vshrl.u32 %v272, 7
        %v274 = vsub.s32 0, %v273
        %v275 = vrot.slane %v271, %v274
        %v280 = vunpack.c.l.b16 %v232
        %v281 = vunpack.c.l.b16 %v233
        %v282 = vunpack.c.l.b16 %v234
        %v283 = vunpack.c.l.b16 %v235
        %v284 = vpack.c.b16 %v281, %v280
        %v285 = vpack.c.b16 %v283, %v282
        %vm286 = vcmask 261120
        %v288 = vsel %vm286, %v284, 0
        %v291 = vsel %vm286, %v285, 0
        %293 = vmatprep.subr.bf16.mxu0 0
        %294 = vmatpush1.bf16.msra.mxu0 %v269
        %295 = vmatprep.subr.bf16.mxu0 0
        %296 = vmatpush1.bf16.msra.mxu0 %v270
        %297 = vmatprep.subr.bf16.mxu0 0
        %298 = vmatpush1.bf16.msra.mxu0 0
        %299 = vmatprep.subr.bf16.mxu0 0
        %300 = vmatpush1.bf16.msra.mxu0 0
        %301 = vmatprep.subr.bf16.mxu0 0
        %302 = vmatpush1.bf16.msra.mxu0 0
        %303 = vmatprep.subr.bf16.mxu0 0
        %304 = vmatpush1.bf16.msra.mxu0 0
        %305 = vmatprep.subr.bf16.mxu0 0
        %306 = vmatpush1.bf16.msra.mxu0 0
        %307 = vmatprep.subr.bf16.mxu0 0
        %308 = vmatpush1.bf16.msra.mxu0 0
        %309 = vmatprep.subr.bf16.mxu0 0
        %310 = vmatpush1.bf16.msra.mxu0 0
        %311 = vmatprep.subr.bf16.mxu0 0
        %312 = vmatpush1.bf16.msra.mxu0 0
        %313 = vmatprep.subr.bf16.mxu0 0
        %314 = vmatpush1.bf16.msra.mxu0 0
        %315 = vmatprep.subr.bf16.mxu0 0
        %316 = vmatpush1.bf16.msra.mxu0 0
        %317 = vmatprep.subr.bf16.mxu0 0
        %318 = vmatpush1.bf16.msra.mxu0 0
        %319 = vmatprep.subr.bf16.mxu0 0
        %320 = vmatpush1.bf16.msra.mxu0 0
        %321 = vmatprep.subr.bf16.mxu0 0
        %322 = vmatpush1.bf16.msra.mxu0 0
        %323 = vmatprep.subr.bf16.mxu0 0
        %324 = vmatpush1.bf16.msra.mxu0 0
        %325 = vmatprep.mubr.bf16.mxu0 0
        %326 = vmatmul.mubr.bf16.gmra.mrb[0].mxu0 %v288
        %v327 = vpop.f32.mrb[0].mxu0
        %v328 = vadd.f32 %v275, %v327
        %v329 = vpop.f32.mrb[0].mxu0
        %v330 = vpop.f32.mrb[0].mxu0
        %v331 = vadd.f32 %v275, %v330
        %v332 = vpop.f32.mrb[0].mxu0
        %333 = vmatprep.mubr.bf16.mxu0 0
        %334 = vmatmul.mubr.bf16.gmra.mrb[0].mxu0 %v291
        %v335 = vpop.f32.mrb[0].mxu0
        %v336 = vadd.f32 %v275, %v335
        %v337 = vpop.f32.mrb[0].mxu0
        %v338 = vpop.f32.mrb[0].mxu0
        %v339 = vadd.f32 %v275, %v338
        %v340 = vpop.f32.mrb[0].mxu0
        %341 = vdwg.mxu0
        %v342 = vmax.f32 %v328, 0.0
        %v343 = vmax.f32 %v331, 0.0
        %v344 = vmax.f32 %v336, 0.0
        %v345 = vmax.f32 %v339, 0.0
        %v346 = vpack.c.bf16 %v343, %v342
        %v347 = vpack.c.bf16 %v345, %v344
        %v348 = vld [vmem:[#allocation2] sm:$0xf]
        %v349 = vld [vmem:[#allocation2 + $0x4] sm:$0xf]
        %v350 = vld [vmem:[#allocation2 + $0x8] sm:$0xf]
        %v351 = vld [vmem:[#allocation2 + $0xc] sm:$0xf]
        %v352 = vld [vmem:[#allocation2 + $0x10] sm:$0xf]
        %v353 = vld [vmem:[#allocation2 + $0x14] sm:$0xf]
        %v354 = vld [vmem:[#allocation2 + $0x18] sm:$0xf]
        %v355 = vld [vmem:[#allocation2 + $0x1c] sm:$0xf]
        %v356 = vld [vmem:[#allocation2 + $0x20] sm:$0xf]
        %v357 = vld [vmem:[#allocation2 + $0x24] sm:$0xf]
        %v358 = vld [vmem:[#allocation2 + $0x28] sm:$0xf]
        %v359 = vld [vmem:[#allocation2 + $0x2c] sm:$0xf]
        %v360 = vld [vmem:[#allocation2 + $0x30] sm:$0xf]
        %v361 = vld [vmem:[#allocation2 + $0x34] sm:$0xf]
        %v362 = vld [vmem:[#allocation2 + $0x38] sm:$0xf]
        %v363 = vld [vmem:[#allocation2 + $0x3c] sm:$0xf]
        %v380 = vunpack.c.l.b16 %v348
        %v381 = vunpack.c.l.b16 %v349
        %v382 = vunpack.c.l.b16 %v350
        %v383 = vunpack.c.l.b16 %v351
        %v384 = vunpack.c.l.b16 %v352
        %v385 = vunpack.c.l.b16 %v353
        %v386 = vunpack.c.l.b16 %v354
        %v387 = vunpack.c.l.b16 %v355
        %v388 = vunpack.c.l.b16 %v356
        %v389 = vunpack.c.l.b16 %v357
        %v390 = vunpack.c.l.b16 %v358
        %v391 = vunpack.c.l.b16 %v359
        %v392 = vunpack.c.l.b16 %v360
        %v393 = vunpack.c.l.b16 %v361
        %v394 = vunpack.c.l.b16 %v362
        %v395 = vunpack.c.l.b16 %v363
        %v396 = vpack.c.b16 %v381, %v380
        %v397 = vpack.c.b16 %v383, %v382
        %v398 = vpack.c.b16 %v385, %v384
        %v399 = vpack.c.b16 %v387, %v386
        %v400 = vpack.c.b16 %v389, %v388
        %v401 = vpack.c.b16 %v391, %v390
        %v402 = vpack.c.b16 %v393, %v392
        %v403 = vpack.c.b16 %v395, %v394
        %412 = vmatprep.subr.bf16.mxu0 0
        %413 = vmatpush1.bf16.msra.mxu0 %v396
        %414 = vmatprep.subr.bf16.mxu0 0
        %415 = vmatpush1.bf16.msra.mxu0 %v397
        %416 = vmatprep.subr.bf16.mxu0 0
        %417 = vmatpush1.bf16.msra.mxu0 %v398
        %418 = vmatprep.subr.bf16.mxu0 0
        %419 = vmatpush1.bf16.msra.mxu0 %v399
        %420 = vmatprep.subr.bf16.mxu0 0
        %421 = vmatpush1.bf16.msra.mxu0 %v400
        %422 = vmatprep.subr.bf16.mxu0 0
        %423 = vmatpush1.bf16.msra.mxu0 %v401
        %424 = vmatprep.subr.bf16.mxu0 0
        %425 = vmatpush1.bf16.msra.mxu0 %v402
        %426 = vmatprep.subr.bf16.mxu0 0
        %427 = vmatpush1.bf16.msra.mxu0 %v403
        %428 = vmatprep.subr.bf16.mxu0 0
        %429 = vmatpush1.bf16.msra.mxu0 0
        %430 = vmatprep.subr.bf16.mxu0 0
        %431 = vmatpush1.bf16.msra.mxu0 0
        %432 = vmatprep.subr.bf16.mxu0 0
        %433 = vmatpush1.bf16.msra.mxu0 0
        %434 = vmatprep.subr.bf16.mxu0 0
        %435 = vmatpush1.bf16.msra.mxu0 0
        %436 = vmatprep.subr.bf16.mxu0 0
        %437 = vmatpush1.bf16.msra.mxu0 0
        %438 = vmatprep.subr.bf16.mxu0 0
        %439 = vmatpush1.bf16.msra.mxu0 0
        %440 = vmatprep.subr.bf16.mxu0 0
        %441 = vmatpush1.bf16.msra.mxu0 0
        %442 = vmatprep.subr.bf16.mxu0 0
        %443 = vmatpush1.bf16.msra.mxu0 0
        %444 = vmatprep.mubr.bf16.mxu0 0
        %445 = vmatmul.mubr.bf16.gmra.mrb[0].mxu0 %v346
        %v446 = vpop.f32.mrb[0].mxu0
        %v447 = vadd.f32 0.0, %v446
        %v448 = vpop.f32.mrb[0].mxu0
        %v449 = vpop.f32.mrb[0].mxu0
        %v450 = vadd.f32 0.0, %v449
        %v451 = vpop.f32.mrb[0].mxu0
        %452 = vmatprep.mubr.bf16.mxu0 0
        %453 = vmatmul.mubr.bf16.gmra.mrb[0].mxu0 %v347
        %v454 = vpop.f32.mrb[0].mxu0
        %v455 = vadd.f32 0.0, %v454
        %v456 = vpop.f32.mrb[0].mxu0
        %v457 = vpop.f32.mrb[0].mxu0
        %v458 = vadd.f32 0.0, %v457
        %v459 = vpop.f32.mrb[0].mxu0
        %460 = vdwg.mxu0
        %v461 = vpack.c.bf16 %v450, %v447
        %v462 = vpack.c.bf16 %v458, %v455
        %v463 = vld [vmem:[%s3 + $0x2] sm:$0x1]
        %v464 = vlaneseq
        %v465 = vshrl.u32 %v464, 7
        %v466 = vsub.s32 0, %v465
        %v467 = vrot.slane %v463, %v466
        %468 = vmatprep.subr.bf16.mxu0 0
        %469 = vmatpush1.bf16.msra.mxu0 %v461
        %470 = vmatprep.subr.bf16.mxu0 0
        %471 = vmatpush1.bf16.msra.mxu0 %v462
        %472 = vmatprep.subr.bf16.mxu0 0
        %473 = vmatpush1.bf16.msra.mxu0 0
        %474 = vmatprep.subr.bf16.mxu0 0
        %475 = vmatpush1.bf16.msra.mxu0 0
        %476 = vmatprep.subr.bf16.mxu0 0
        %477 = vmatpush1.bf16.msra.mxu0 0
        %478 = vmatprep.subr.bf16.mxu0 0
        %479 = vmatpush1.bf16.msra.mxu0 0
        %480 = vmatprep.subr.bf16.mxu0 0
        %481 = vmatpush1.bf16.msra.mxu0 0
        %482 = vmatprep.subr.bf16.mxu0 0
        %483 = vmatpush1.bf16.msra.mxu0 0
        %484 = vmatprep.subr.bf16.mxu0 0
        %485 = vmatpush1.bf16.msra.mxu0 0
        %486 = vmatprep.subr.bf16.mxu0 0
        %487 = vmatpush1.bf16.msra.mxu0 0
        %488 = vmatprep.subr.bf16.mxu0 0
        %489 = vmatpush1.bf16.msra.mxu0 0
        %490 = vmatprep.subr.bf16.mxu0 0
        %491 = vmatpush1.bf16.msra.mxu0 0
        %492 = vmatprep.subr.bf16.mxu0 0
        %493 = vmatpush1.bf16.msra.mxu0 0
        %494 = vmatprep.subr.bf16.mxu0 0
        %495 = vmatpush1.bf16.msra.mxu0 0
        %496 = vmatprep.subr.bf16.mxu0 0
        %497 = vmatpush1.bf16.msra.mxu0 0
        %498 = vmatprep.subr.bf16.mxu0 0
        %499 = vmatpush1.bf16.msra.mxu0 0
        %500 = vmatprep.mubr.bf16.mxu0 0
        %501 = vmatmul.mubr.bf16.gmra.mrb[0].mxu0 %v288
        %v502 = vpop.f32.mrb[0].mxu0
        %v503 = vadd.f32 %v467, %v502
        %v504 = vpop.f32.mrb[0].mxu0
        %v505 = vpop.f32.mrb[0].mxu0
        %v506 = vadd.f32 %v467, %v505
        %v507 = vpop.f32.mrb[0].mxu0
        %508 = vmatprep.mubr.bf16.mxu0 0
        %509 = vmatmul.mubr.bf16.gmra.mrb[0].mxu0 %v291
        %v510 = vpop.f32.mrb[0].mxu0
        %v511 = vadd.f32 %v467, %v510
        %v512 = vpop.f32.mrb[0].mxu0
        %v513 = vpop.f32.mrb[0].mxu0
        %v514 = vadd.f32 %v467, %v513
        %v515 = vpop.f32.mrb[0].mxu0
        %516 = vdwg.mxu0
        %v517 = vmax.f32 %v503, 0.0
        %v518 = vmax.f32 %v506, 0.0
        %v519 = vmax.f32 %v511, 0.0
        %v520 = vmax.f32 %v514, 0.0
        %v521 = vpack.c.bf16 %v518, %v517
        %v522 = vpack.c.bf16 %v520, %v519
        %s523 = scalar_lea.vmem [#allocation2], 64
        %v524 = vld [vmem:[%s523] sm:$0xf]
        %v525 = vld [vmem:[%s523 + $0x4] sm:$0xf]
        %v526 = vld [vmem:[%s523 + $0x8] sm:$0xf]
        %v527 = vld [vmem:[%s523 + $0xc] sm:$0xf]
        %v528 = vld [vmem:[%s523 + $0x10] sm:$0xf]
        %v529 = vld [vmem:[%s523 + $0x14] sm:$0xf]
        %v530 = vld [vmem:[%s523 + $0x18] sm:$0xf]
        %v531 = vld [vmem:[%s523 + $0x1c] sm:$0xf]
        %v532 = vld [vmem:[%s523 + $0x20] sm:$0xf]
        %v533 = vld [vmem:[%s523 + $0x24] sm:$0xf]
        %v534 = vld [vmem:[%s523 + $0x28] sm:$0xf]
        %v535 = vld [vmem:[%s523 + $0x2c] sm:$0xf]
        %v536 = vld [vmem:[%s523 + $0x30] sm:$0xf]
        %v537 = vld [vmem:[%s523 + $0x34] sm:$0xf]
        %v538 = vld [vmem:[%s523 + $0x38] sm:$0xf]
        %v539 = vld [vmem:[%s523 + $0x3c] sm:$0xf]
        %v556 = vunpack.c.l.b16 %v524
        %v557 = vunpack.c.l.b16 %v525
        %v558 = vunpack.c.l.b16 %v526
        %v559 = vunpack.c.l.b16 %v527
        %v560 = vunpack.c.l.b16 %v528
        %v561 = vunpack.c.l.b16 %v529
        %v562 = vunpack.c.l.b16 %v530
        %v563 = vunpack.c.l.b16 %v531
        %v564 = vunpack.c.l.b16 %v532
        %v565 = vunpack.c.l.b16 %v533
        %v566 = vunpack.c.l.b16 %v534
        %v567 = vunpack.c.l.b16 %v535
        %v568 = vunpack.c.l.b16 %v536
        %v569 = vunpack.c.l.b16 %v537
        %v570 = vunpack.c.l.b16 %v538
        %v571 = vunpack.c.l.b16 %v539
        %v572 = vpack.c.b16 %v557, %v556
        %v573 = vpack.c.b16 %v559, %v558
        %v574 = vpack.c.b16 %v561, %v560
        %v575 = vpack.c.b16 %v563, %v562
        %v576 = vpack.c.b16 %v565, %v564
        %v577 = vpack.c.b16 %v567, %v566
        %v578 = vpack.c.b16 %v569, %v568
        %v579 = vpack.c.b16 %v571, %v570
        %588 = vmatprep.subr.bf16.mxu0 0
        %589 = vmatpush1.bf16.msra.mxu0 %v572
        %590 = vmatprep.subr.bf16.mxu0 0
        %591 = vmatpush1.bf16.msra.mxu0 %v573
        %592 = vmatprep.subr.bf16.mxu0 0
        %593 = vmatpush1.bf16.msra.mxu0 %v574
        %594 = vmatprep.subr.bf16.mxu0 0
        %595 = vmatpush1.bf16.msra.mxu0 %v575
        %596 = vmatprep.subr.bf16.mxu0 0
        %597 = vmatpush1.bf16.msra.mxu0 %v576
        %598 = vmatprep.subr.bf16.mxu0 0
        %599 = vmatpush1.bf16.msra.mxu0 %v577
        %600 = vmatprep.subr.bf16.mxu0 0
        %601 = vmatpush1.bf16.msra.mxu0 %v578
        %602 = vmatprep.subr.bf16.mxu0 0
        %603 = vmatpush1.bf16.msra.mxu0 %v579
        %604 = vmatprep.subr.bf16.mxu0 0
        %605 = vmatpush1.bf16.msra.mxu0 0
        %606 = vmatprep.subr.bf16.mxu0 0
        %607 = vmatpush1.bf16.msra.mxu0 0
        %608 = vmatprep.subr.bf16.mxu0 0
        %609 = vmatpush1.bf16.msra.mxu0 0
        %610 = vmatprep.subr.bf16.mxu0 0
        %611 = vmatpush1.bf16.msra.mxu0 0
        %612 = vmatprep.subr.bf16.mxu0 0
        %613 = vmatpush1.bf16.msra.mxu0 0
        %614 = vmatprep.subr.bf16.mxu0 0
        %615 = vmatpush1.bf16.msra.mxu0 0
        %616 = vmatprep.subr.bf16.mxu0 0
        %617 = vmatpush1.bf16.msra.mxu0 0
        %618 = vmatprep.subr.bf16.mxu0 0
        %619 = vmatpush1.bf16.msra.mxu0 0
        %620 = vmatprep.mubr.bf16.mxu0 0
        %621 = vmatmul.mubr.bf16.gmra.mrb[0].mxu0 %v521
        %v622 = vpop.f32.mrb[0].mxu0
        %v623 = vadd.f32 0.0, %v622
        %v624 = vpop.f32.mrb[0].mxu0
        %v625 = vpop.f32.mrb[0].mxu0
        %v626 = vadd.f32 0.0, %v625
        %v627 = vpop.f32.mrb[0].mxu0
        %628 = vmatprep.mubr.bf16.mxu0 0
        %629 = vmatmul.mubr.bf16.gmra.mrb[0].mxu0 %v522
        %v630 = vpop.f32.mrb[0].mxu0
        %v631 = vadd.f32 0.0, %v630
        %v632 = vpop.f32.mrb[0].mxu0
        %v633 = vpop.f32.mrb[0].mxu0
        %v634 = vadd.f32 0.0, %v633
        %v635 = vpop.f32.mrb[0].mxu0
        %636 = vdwg.mxu0
        %v637 = vpack.c.bf16 %v626, %v623
        %v638 = vpack.c.bf16 %v634, %v631
        %v639 = vld [vmem:[%s3 + $0x3] sm:$0x1]
        %v640 = vlaneseq
        %v641 = vshrl.u32 %v640, 7
        %v642 = vsub.s32 0, %v641
        %v643 = vrot.slane %v639, %v642
        %644 = vmatprep.subr.bf16.mxu0 0
        %645 = vmatpush1.bf16.msra.mxu0 %v637
        %646 = vmatprep.subr.bf16.mxu0 0
        %647 = vmatpush1.bf16.msra.mxu0 %v638
        %648 = vmatprep.subr.bf16.mxu0 0
        %649 = vmatpush1.bf16.msra.mxu0 0
        %650 = vmatprep.subr.bf16.mxu0 0
        %651 = vmatpush1.bf16.msra.mxu0 0
        %652 = vmatprep.subr.bf16.mxu0 0
        %653 = vmatpush1.bf16.msra.mxu0 0
        %654 = vmatprep.subr.bf16.mxu0 0
        %655 = vmatpush1.bf16.msra.mxu0 0
        %656 = vmatprep.subr.bf16.mxu0 0
        %657 = vmatpush1.bf16.msra.mxu0 0
        %658 = vmatprep.subr.bf16.mxu0 0
        %659 = vmatpush1.bf16.msra.mxu0 0
        %660 = vmatprep.subr.bf16.mxu0 0
        %661 = vmatpush1.bf16.msra.mxu0 0
        %662 = vmatprep.subr.bf16.mxu0 0
        %663 = vmatpush1.bf16.msra.mxu0 0
        %664 = vmatprep.subr.bf16.mxu0 0
        %665 = vmatpush1.bf16.msra.mxu0 0
        %666 = vmatprep.subr.bf16.mxu0 0
        %667 = vmatpush1.bf16.msra.mxu0 0
        %668 = vmatprep.subr.bf16.mxu0 0
        %669 = vmatpush1.bf16.msra.mxu0 0
        %670 = vmatprep.subr.bf16.mxu0 0
        %671 = vmatpush1.bf16.msra.mxu0 0
        %672 = vmatprep.subr.bf16.mxu0 0
        %673 = vmatpush1.bf16.msra.mxu0 0
        %674 = vmatprep.subr.bf16.mxu0 0
        %675 = vmatpush1.bf16.msra.mxu0 0
        %676 = vmatprep.mubr.bf16.mxu0 0
        %677 = vmatmul.mubr.bf16.gmra.mrb[0].mxu0 %v288
        %v678 = vpop.f32.mrb[0].mxu0
        %v679 = vadd.f32 %v643, %v678
        %v680 = vpop.f32.mrb[0].mxu0
        %v681 = vpop.f32.mrb[0].mxu0
        %v682 = vadd.f32 %v643, %v681
        %v683 = vpop.f32.mrb[0].mxu0
        %684 = vmatprep.mubr.bf16.mxu0 0
        %685 = vmatmul.mubr.bf16.gmra.mrb[0].mxu0 %v291
        %v686 = vpop.f32.mrb[0].mxu0
        %v687 = vadd.f32 %v643, %v686
        %v688 = vpop.f32.mrb[0].mxu0
        %v689 = vpop.f32.mrb[0].mxu0
        %v690 = vadd.f32 %v643, %v689
        %v691 = vpop.f32.mrb[0].mxu0
        %692 = vdwg.mxu0
        %v693 = vmax.f32 %v679, 0.0
        %v694 = vmax.f32 %v682, 0.0
        %v695 = vmax.f32 %v687, 0.0
        %v696 = vmax.f32 %v690, 0.0
        %v697 = vpack.c.bf16 %v694, %v693
        %v698 = vpack.c.bf16 %v696, %v695
        %s699 = scalar_lea.vmem [#allocation2], 128
        %v700 = vld [vmem:[%s699] sm:$0xf]
        %v701 = vld [vmem:[%s699 + $0x4] sm:$0xf]
        %v702 = vld [vmem:[%s699 + $0x8] sm:$0xf]
        %v703 = vld [vmem:[%s699 + $0xc] sm:$0xf]
        %v704 = vld [vmem:[%s699 + $0x10] sm:$0xf]
        %v705 = vld [vmem:[%s699 + $0x14] sm:$0xf]
        %v706 = vld [vmem:[%s699 + $0x18] sm:$0xf]
        %v707 = vld [vmem:[%s699 + $0x1c] sm:$0xf]
        %v708 = vld [vmem:[%s699 + $0x20] sm:$0xf]
        %v709 = vld [vmem:[%s699 + $0x24] sm:$0xf]
        %v710 = vld [vmem:[%s699 + $0x28] sm:$0xf]
        %v711 = vld [vmem:[%s699 + $0x2c] sm:$0xf]
        %v712 = vld [vmem:[%s699 + $0x30] sm:$0xf]
        %v713 = vld [vmem:[%s699 + $0x34] sm:$0xf]
        %v714 = vld [vmem:[%s699 + $0x38] sm:$0xf]
        %v715 = vld [vmem:[%s699 + $0x3c] sm:$0xf]
        %v732 = vunpack.c.l.b16 %v700
        %v733 = vunpack.c.l.b16 %v701
        %v734 = vunpack.c.l.b16 %v702
        %v735 = vunpack.c.l.b16 %v703
        %v736 = vunpack.c.l.b16 %v704
        %v737 = vunpack.c.l.b16 %v705
        %v738 = vunpack.c.l.b16 %v706
        %v739 = vunpack.c.l.b16 %v707
        %v740 = vunpack.c.l.b16 %v708
        %v741 = vunpack.c.l.b16 %v709
        %v742 = vunpack.c.l.b16 %v710
        %v743 = vunpack.c.l.b16 %v711
        %v744 = vunpack.c.l.b16 %v712
        %v745 = vunpack.c.l.b16 %v713
        %v746 = vunpack.c.l.b16 %v714
        %v747 = vunpack.c.l.b16 %v715
        %v748 = vpack.c.b16 %v733, %v732
        %v749 = vpack.c.b16 %v735, %v734
        %v750 = vpack.c.b16 %v737, %v736
        %v751 = vpack.c.b16 %v739, %v738
        %v752 = vpack.c.b16 %v741, %v740
        %v753 = vpack.c.b16 %v743, %v742
        %v754 = vpack.c.b16 %v745, %v744
        %v755 = vpack.c.b16 %v747, %v746
        %764 = vmatprep.subr.bf16.mxu0 0
        %765 = vmatpush1.bf16.msra.mxu0 %v748
        %766 = vmatprep.subr.bf16.mxu0 0
        %767 = vmatpush1.bf16.msra.mxu0 %v749
        %768 = vmatprep.subr.bf16.mxu0 0
        %769 = vmatpush1.bf16.msra.mxu0 %v750
        %770 = vmatprep.subr.bf16.mxu0 0
        %771 = vmatpush1.bf16.msra.mxu0 %v751
        %772 = vmatprep.subr.bf16.mxu0 0
        %773 = vmatpush1.bf16.msra.mxu0 %v752
        %774 = vmatprep.subr.bf16.mxu0 0
        %775 = vmatpush1.bf16.msra.mxu0 %v753
        %776 = vmatprep.subr.bf16.mxu0 0
        %777 = vmatpush1.bf16.msra.mxu0 %v754
        %778 = vmatprep.subr.bf16.mxu0 0
        %779 = vmatpush1.bf16.msra.mxu0 %v755
        %780 = vmatprep.subr.bf16.mxu0 0
        %781 = vmatpush1.bf16.msra.mxu0 0
        %782 = vmatprep.subr.bf16.mxu0 0
        %783 = vmatpush1.bf16.msra.mxu0 0
        %784 = vmatprep.subr.bf16.mxu0 0
        %785 = vmatpush1.bf16.msra.mxu0 0
        %786 = vmatprep.subr.bf16.mxu0 0
        %787 = vmatpush1.bf16.msra.mxu0 0
        %788 = vmatprep.subr.bf16.mxu0 0
        %789 = vmatpush1.bf16.msra.mxu0 0
        %790 = vmatprep.subr.bf16.mxu0 0
        %791 = vmatpush1.bf16.msra.mxu0 0
        %792 = vmatprep.subr.bf16.mxu0 0
        %793 = vmatpush1.bf16.msra.mxu0 0
        %794 = vmatprep.subr.bf16.mxu0 0
        %795 = vmatpush1.bf16.msra.mxu0 0
        %796 = vmatprep.mubr.bf16.mxu0 0
        %797 = vmatmul.mubr.bf16.gmra.mrb[0].mxu0 %v697
        %v798 = vpop.f32.mrb[0].mxu0
        %v799 = vadd.f32 0.0, %v798
        %v800 = vpop.f32.mrb[0].mxu0
        %v801 = vpop.f32.mrb[0].mxu0
        %v802 = vadd.f32 0.0, %v801
        %v803 = vpop.f32.mrb[0].mxu0
        %804 = vmatprep.mubr.bf16.mxu0 0
        %805 = vmatmul.mubr.bf16.gmra.mrb[0].mxu0 %v698
        %v806 = vpop.f32.mrb[0].mxu0
        %v807 = vadd.f32 0.0, %v806
        %v808 = vpop.f32.mrb[0].mxu0
        %v809 = vpop.f32.mrb[0].mxu0
        %v810 = vadd.f32 0.0, %v809
        %v811 = vpop.f32.mrb[0].mxu0
        %812 = vdwg.mxu0
        %v813 = vpack.c.bf16 %v802, %v799
        %v814 = vpack.c.bf16 %v810, %v807
        %v815 = vld [vmem:[%s3 + $0x4] sm:$0x1]
        %v816 = vlaneseq
        %v817 = vshrl.u32 %v816, 7
        %v818 = vsub.s32 0, %v817
        %v819 = vrot.slane %v815, %v818
        %820 = vmatprep.subr.bf16.mxu0 0
        %821 = vmatpush1.bf16.msra.mxu0 %v813
        %822 = vmatprep.subr.bf16.mxu0 0
        %823 = vmatpush1.bf16.msra.mxu0 %v814
        %824 = vmatprep.subr.bf16.mxu0 0
        %825 = vmatpush1.bf16.msra.mxu0 0
        %826 = vmatprep.subr.bf16.mxu0 0
        %827 = vmatpush1.bf16.msra.mxu0 0
        %828 = vmatprep.subr.bf16.mxu0 0
        %829 = vmatpush1.bf16.msra.mxu0 0
        %830 = vmatprep.subr.bf16.mxu0 0
        %831 = vmatpush1.bf16.msra.mxu0 0
        %832 = vmatprep.subr.bf16.mxu0 0
        %833 = vmatpush1.bf16.msra.mxu0 0
        %834 = vmatprep.subr.bf16.mxu0 0
        %835 = vmatpush1.bf16.msra.mxu0 0
        %836 = vmatprep.subr.bf16.mxu0 0
        %837 = vmatpush1.bf16.msra.mxu0 0
        %838 = vmatprep.subr.bf16.mxu0 0
        %839 = vmatpush1.bf16.msra.mxu0 0
        %840 = vmatprep.subr.bf16.mxu0 0
        %841 = vmatpush1.bf16.msra.mxu0 0
        %842 = vmatprep.subr.bf16.mxu0 0
        %843 = vmatpush1.bf16.msra.mxu0 0
        %844 = vmatprep.subr.bf16.mxu0 0
        %845 = vmatpush1.bf16.msra.mxu0 0
        %846 = vmatprep.subr.bf16.mxu0 0
        %847 = vmatpush1.bf16.msra.mxu0 0
        %848 = vmatprep.subr.bf16.mxu0 0
        %849 = vmatpush1.bf16.msra.mxu0 0
        %850 = vmatprep.subr.bf16.mxu0 0
        %851 = vmatpush1.bf16.msra.mxu0 0
        %852 = vmatprep.mubr.bf16.mxu0 0
        %853 = vmatmul.mubr.bf16.gmra.mrb[0].mxu0 %v288
        %v854 = vpop.f32.mrb[0].mxu0
        %v855 = vadd.f32 %v819, %v854
        %v856 = vpop.f32.mrb[0].mxu0
        %v857 = vpop.f32.mrb[0].mxu0
        %v858 = vadd.f32 %v819, %v857
        %v859 = vpop.f32.mrb[0].mxu0
        %860 = vmatprep.mubr.bf16.mxu0 0
        %861 = vmatmul.mubr.bf16.gmra.mrb[0].mxu0 %v291
        %v862 = vpop.f32.mrb[0].mxu0
        %v863 = vadd.f32 %v819, %v862
        %v864 = vpop.f32.mrb[0].mxu0
        %v865 = vpop.f32.mrb[0].mxu0
        %v866 = vadd.f32 %v819, %v865
        %v867 = vpop.f32.mrb[0].mxu0
        %868 = vdwg.mxu0
        %v869 = vmax.f32 %v855, 0.0
        %v870 = vmax.f32 %v858, 0.0
        %v871 = vmax.f32 %v863, 0.0
        %v872 = vmax.f32 %v866, 0.0
        %v873 = vpack.c.bf16 %v870, %v869
        %v874 = vpack.c.bf16 %v872, %v871
        %v875 = vunpack.c.l.bf16 %v873
        %v876 = vunpack.c.h.bf16 %v873
        %v877 = vmax.f32 %v875, %v876
        %v878 = vrot.slane %v877, 4
        %v879 = vmax.f32 %v877, %v878
        %v880 = vrot.slane %v879, 2
        %v881 = vmax.f32 %v879, %v880
        %v882 = vrot.slane %v881, 1
        %v883 = vmax.f32 %v881, %v882
        %v884 = vunpack.c.l.bf16 %v874
        %v885 = vunpack.c.h.bf16 %v874
        %v886 = vmax.f32 %v884, %v885
        %v887 = vrot.slane %v886, 4
        %v888 = vmax.f32 %v886, %v887
        %v889 = vrot.slane %v888, 2
        %v890 = vmax.f32 %v888, %v889
        %v891 = vrot.slane %v890, 1
        %v892 = vmax.f32 %v890, %v891
        %vm893 = vcmask 1040384
        %v894 = vsel %vm893, %v883, %v892
        %vm895 = vcmask 1041408
        %v896 = vsel %vm895, %v894, 0.0
        %v897 = vpack.c.bf16 %v896, %v896
        %s898 = scalar_lea.vmem [#allocation2], 192
        %v899 = vld [vmem:[%s898] sm:$0xf]
        %v900 = vld [vmem:[%s898 + $0x4] sm:$0xf]
        %v901 = vld [vmem:[%s898 + $0x8] sm:$0xf]
        %v902 = vld [vmem:[%s898 + $0xc] sm:$0xf]
        %v903 = vld [vmem:[%s898 + $0x10] sm:$0xf]
        %v904 = vld [vmem:[%s898 + $0x14] sm:$0xf]
        %v905 = vld [vmem:[%s898 + $0x18] sm:$0xf]
        %v906 = vld [vmem:[%s898 + $0x1c] sm:$0xf]
        %v907 = vld [vmem:[%s898 + $0x20] sm:$0xf]
        %v908 = vld [vmem:[%s898 + $0x24] sm:$0xf]
        %v909 = vld [vmem:[%s898 + $0x28] sm:$0xf]
        %v910 = vld [vmem:[%s898 + $0x2c] sm:$0xf]
        %v911 = vld [vmem:[%s898 + $0x30] sm:$0xf]
        %v912 = vld [vmem:[%s898 + $0x34] sm:$0xf]
        %v913 = vld [vmem:[%s898 + $0x38] sm:$0xf]
        %v914 = vld [vmem:[%s898 + $0x3c] sm:$0xf]
        %v915 = vld [vmem:[%s3 + $0x5] sm:$0x1]
        %v916 = vlaneseq
        %v917 = vshrl.u32 %v916, 7
        %v918 = vsub.s32 0, %v917
        %v919 = vrot.slane %v915, %v918
        %v936 = vunpack.c.l.b16 %v899
        %v937 = vunpack.c.l.b16 %v900
        %v938 = vunpack.c.l.b16 %v901
        %v939 = vunpack.c.l.b16 %v902
        %v940 = vunpack.c.l.b16 %v903
        %v941 = vunpack.c.l.b16 %v904
        %v942 = vunpack.c.l.b16 %v905
        %v943 = vunpack.c.l.b16 %v906
        %v944 = vunpack.c.l.b16 %v907
        %v945 = vunpack.c.l.b16 %v908
        %v946 = vunpack.c.l.b16 %v909
        %v947 = vunpack.c.l.b16 %v910
        %v948 = vunpack.c.l.b16 %v911
        %v949 = vunpack.c.l.b16 %v912
        %v950 = vunpack.c.l.b16 %v913
        %v951 = vunpack.c.l.b16 %v914
        %v952 = vpack.c.b16 %v937, %v936
        %v953 = vpack.c.b16 %v939, %v938
        %v954 = vpack.c.b16 %v941, %v940
        %v955 = vpack.c.b16 %v943, %v942
        %v956 = vpack.c.b16 %v945, %v944
        %v957 = vpack.c.b16 %v947, %v946
        %v958 = vpack.c.b16 %v949, %v948
        %v959 = vpack.c.b16 %v951, %v950
        %968 = vmatprep.subr.bf16.mxu0 0
        %969 = vmatpush1.bf16.msra.mxu0 %v952
        %970 = vmatprep.subr.bf16.mxu0 0
        %971 = vmatpush1.bf16.msra.mxu0 %v953
        %972 = vmatprep.subr.bf16.mxu0 0
        %973 = vmatpush1.bf16.msra.mxu0 %v954
        %974 = vmatprep.subr.bf16.mxu0 0
        %975 = vmatpush1.bf16.msra.mxu0 %v955
        %976 = vmatprep.subr.bf16.mxu0 0
        %977 = vmatpush1.bf16.msra.mxu0 %v956
        %978 = vmatprep.subr.bf16.mxu0 0
        %979 = vmatpush1.bf16.msra.mxu0 %v957
        %980 = vmatprep.subr.bf16.mxu0 0
        %981 = vmatpush1.bf16.msra.mxu0 %v958
        %982 = vmatprep.subr.bf16.mxu0 0
        %983 = vmatpush1.bf16.msra.mxu0 %v959
        %984 = vmatprep.subr.bf16.mxu0 0
        %985 = vmatpush1.bf16.msra.mxu0 0
        %986 = vmatprep.subr.bf16.mxu0 0
        %987 = vmatpush1.bf16.msra.mxu0 0
        %988 = vmatprep.subr.bf16.mxu0 0
        %989 = vmatpush1.bf16.msra.mxu0 0
        %990 = vmatprep.subr.bf16.mxu0 0
        %991 = vmatpush1.bf16.msra.mxu0 0
        %992 = vmatprep.subr.bf16.mxu0 0
        %993 = vmatpush1.bf16.msra.mxu0 0
        %994 = vmatprep.subr.bf16.mxu0 0
        %995 = vmatpush1.bf16.msra.mxu0 0
        %996 = vmatprep.subr.bf16.mxu0 0
        %997 = vmatpush1.bf16.msra.mxu0 0
        %998 = vmatprep.subr.bf16.mxu0 0
        %999 = vmatpush1.bf16.msra.mxu0 0
        %1000 = vmatprep.mubr.bf16.mxu0 0
        %1001 = vmatmul.mubr.bf16.gmra.mrb[0].mxu0 %v897
        %v1002 = vpop.f32.mrb[0].mxu0
        %v1003 = vadd.f32 %v919, %v1002
        %v1004 = vpop.f32.mrb[0].mxu0
        %v1005 = vpop.f32.mrb[0].mxu0
        %v1006 = vpop.f32.mrb[0].mxu0
        %1007 = vdwg.mxu0
        %v1008 = vmax.f32 %v1003, 0.0
        %v1009 = vpack.c.bf16 %v1008, %v1008
        %s1010 = scalar_lea.vmem [#allocation2], 256
        %v1011 = vld [vmem:[%s1010] sm:$0xf]
        %v1012 = vld [vmem:[%s1010 + $0x4] sm:$0xf]
        %v1013 = vld [vmem:[%s1010 + $0x8] sm:$0xf]
        %v1014 = vld [vmem:[%s1010 + $0xc] sm:$0xf]
        %v1015 = vld [vmem:[%s1010 + $0x10] sm:$0xf]
        %v1016 = vld [vmem:[%s1010 + $0x14] sm:$0xf]
        %v1017 = vld [vmem:[%s1010 + $0x18] sm:$0xf]
        %v1018 = vld [vmem:[%s1010 + $0x1c] sm:$0xf]
        %v1019 = vld [vmem:[%s1010 + $0x20] sm:$0xf]
        %v1020 = vld [vmem:[%s1010 + $0x24] sm:$0xf]
        %v1021 = vld [vmem:[%s1010 + $0x28] sm:$0xf]
        %v1022 = vld [vmem:[%s1010 + $0x2c] sm:$0xf]
        %v1023 = vld [vmem:[%s1010 + $0x30] sm:$0xf]
        %v1024 = vld [vmem:[%s1010 + $0x34] sm:$0xf]
        %v1025 = vld [vmem:[%s1010 + $0x38] sm:$0xf]
        %v1026 = vld [vmem:[%s1010 + $0x3c] sm:$0xf]
        %v1027 = vld [vmem:[%s3 + $0x6] sm:$0x1]
        %v1028 = vlaneseq
        %v1029 = vshrl.u32 %v1028, 7
        %v1030 = vsub.s32 0, %v1029
        %v1031 = vrot.slane %v1027, %v1030
        %v1048 = vunpack.c.l.b16 %v1011
        %v1049 = vunpack.c.l.b16 %v1012
        %v1050 = vunpack.c.l.b16 %v1013
        %v1051 = vunpack.c.l.b16 %v1014
        %v1052 = vunpack.c.l.b16 %v1015
        %v1053 = vunpack.c.l.b16 %v1016
        %v1054 = vunpack.c.l.b16 %v1017
        %v1055 = vunpack.c.l.b16 %v1018
        %v1056 = vunpack.c.l.b16 %v1019
        %v1057 = vunpack.c.l.b16 %v1020
        %v1058 = vunpack.c.l.b16 %v1021
        %v1059 = vunpack.c.l.b16 %v1022
        %v1060 = vunpack.c.l.b16 %v1023
        %v1061 = vunpack.c.l.b16 %v1024
        %v1062 = vunpack.c.l.b16 %v1025
        %v1063 = vunpack.c.l.b16 %v1026
        %v1064 = vpack.c.b16 %v1049, %v1048
        %v1065 = vpack.c.b16 %v1051, %v1050
        %v1066 = vpack.c.b16 %v1053, %v1052
        %v1067 = vpack.c.b16 %v1055, %v1054
        %v1068 = vpack.c.b16 %v1057, %v1056
        %v1069 = vpack.c.b16 %v1059, %v1058
        %v1070 = vpack.c.b16 %v1061, %v1060
        %v1071 = vpack.c.b16 %v1063, %v1062
        %1080 = vmatprep.subr.bf16.mxu0 0
        %1081 = vmatpush1.bf16.msra.mxu0 %v1064
        %1082 = vmatprep.subr.bf16.mxu0 0
        %1083 = vmatpush1.bf16.msra.mxu0 %v1065
        %1084 = vmatprep.subr.bf16.mxu0 0
        %1085 = vmatpush1.bf16.msra.mxu0 %v1066
        %1086 = vmatprep.subr.bf16.mxu0 0
        %1087 = vmatpush1.bf16.msra.mxu0 %v1067
        %1088 = vmatprep.subr.bf16.mxu0 0
        %1089 = vmatpush1.bf16.msra.mxu0 %v1068
        %1090 = vmatprep.subr.bf16.mxu0 0
        %1091 = vmatpush1.bf16.msra.mxu0 %v1069
        %1092 = vmatprep.subr.bf16.mxu0 0
        %1093 = vmatpush1.bf16.msra.mxu0 %v1070
        %1094 = vmatprep.subr.bf16.mxu0 0
        %1095 = vmatpush1.bf16.msra.mxu0 %v1071
        %1096 = vmatprep.subr.bf16.mxu0 0
        %1097 = vmatpush1.bf16.msra.mxu0 0
        %1098 = vmatprep.subr.bf16.mxu0 0
        %1099 = vmatpush1.bf16.msra.mxu0 0
        %1100 = vmatprep.subr.bf16.mxu0 0
        %1101 = vmatpush1.bf16.msra.mxu0 0
        %1102 = vmatprep.subr.bf16.mxu0 0
        %1103 = vmatpush1.bf16.msra.mxu0 0
        %1104 = vmatprep.subr.bf16.mxu0 0
        %1105 = vmatpush1.bf16.msra.mxu0 0
        %1106 = vmatprep.subr.bf16.mxu0 0
        %1107 = vmatpush1.bf16.msra.mxu0 0
        %1108 = vmatprep.subr.bf16.mxu0 0
        %1109 = vmatpush1.bf16.msra.mxu0 0
        %1110 = vmatprep.subr.bf16.mxu0 0
        %1111 = vmatpush1.bf16.msra.mxu0 0
        %1112 = vmatprep.mubr.bf16.mxu0 0
        %1113 = vmatmul.mubr.bf16.gmra.mrb[0].mxu0 %v1009
        %v1114 = vpop.f32.mrb[0].mxu0
        %v1115 = vadd.f32 %v1031, %v1114
        %v1116 = vpop.f32.mrb[0].mxu0
        %v1117 = vpop.f32.mrb[0].mxu0
        %v1118 = vpop.f32.mrb[0].mxu0
        %1119 = vdwg.mxu0
        %1120 = vst [vmem:[%s220] sm:$0xff] %v1115
        %s1121 = sand.u32 %s121, 1
        %s1122 = scalar_lea.sflag [#allocation4], %s1121
        %s1123 = sand.u32 %s121, 1
        %s1124 = smul.addr %s1123, 8
        %s1125 = scalar_lea.vmem [#allocation5], %s1124
        // Predicated region
        $region41: #{tpu_custom_call.1} parent=35 // pred_check
          %p1126 = pneg %p131
        $region42: #{tpu_custom_call.1} parent=35 // pred_check_branch
          %1128 = sbr.rel (%p1126) target = $region44
        $region43: #{tpu_custom_call.1} parent=35 // pred_region
          %s1130 = ssub.s32 128, 128
          %1131 = vsyncadd %s1122, %s1130
          %s1132 = smul.addr %s19, 128
          %s1133 = scalar_lea.hbm %s4, %s1132
          %s1135 = sshll.u32 %s1125, 4
          %s1136 = int_to_ptr.vmem [resolvable:$true] %s1135
          %1138 = dma.vmem_to_hbm [thread:$0]  %s1136, 128, %s1133, %s1122
        $region44: #{tpu_custom_call.1} parent=35 // pred_fallthru
          _
      $region36: #{tpu_custom_call.1} parent=5 // pred_fallthru
        _
      %p1139 = scmp.le.s32.totalorder 2, %s14
      // Predicated region
      $region45: #{tpu_custom_call.1} parent=5 // pred_check
        %p1140 = pneg %p1139
      $region46: #{tpu_custom_call.1} parent=5 // pred_check_branch
        %1142 = sbr.rel (%p1140) target = $region48
      $region47: #{tpu_custom_call.1} parent=5 // pred_region
        %s1143 = ssub.s32 %s14, 2
        // Predicated region
        $region49: #{tpu_custom_call.1} parent=47 // pred_check
          %p1144 = pneg %p137
        $region50: #{tpu_custom_call.1} parent=47 // pred_check_branch
          %1146 = sbr.rel (%p1144) target = $region52
        $region51: #{tpu_custom_call.1} parent=47 // pred_region
          %s1147 = sand.u32 %s122, 1
          %s1148 = scalar_lea.sflag [#allocation4], %s1147
          %s1149 = sand.u32 %s122, 1
          %s1150 = smul.addr %s1149, 8
          %s1151 = scalar_lea.vmem [#allocation5], %s1150
          %1152 = dma.done %s1148, 128
        $region52: #{tpu_custom_call.1} parent=47 // pred_fallthru
          _
      $region48: #{tpu_custom_call.1} parent=5 // pred_fallthru
        _
    $region6: #{tpu_custom_call.1} parent=1 // loop_footer
      %s18 = sadd.s32 1, %s14
    $region7: #{tpu_custom_call.1} parent=1 // loop_footer_branch
      %13 = sbr.rel target = $region3
    $region8: #{tpu_custom_call.1} parent=1 // loop_exit
      _
    %1153 = vsyncpa [#allocation3], 1
    %s1154 = scalar_lea.sflag [#allocation3], 1
    %1155 = vsyncpa %s1154, 1
    %1156 = vsyncpa [#allocation4], 1
    %s1157 = scalar_lea.sflag [#allocation4], 1
    %1158 = vsyncpa %s1157, 1

</llo_original>
